<compile_context>
chip_gen: v7x
topology: tpu7x:2x2x1
jax: 0.10.0
libtpu: 0.0.40
codegen_flags: <defaults>
</compile_context>

<pallas_src>
import functools

import jax
import jax.numpy as jnp
from jax.experimental import pallas as pl
from jax.experimental.pallas import tpu as pltpu

F = 42                  # BatchNorm1d(42), Linear(42, 1)
EPS = 1e-5              # PyTorch BatchNorm1d default eps
LANES = 128             # TPU vreg lane width
PACKED = LANES * F      # lane-dense packed width: 128 original rows per packed row
DEFAULT_ROW_TILE = 512  # 512 packed rows == 65536 original rows per grid step
                        #   x block = 512*5376*4 B ~ 10.5 MiB (no lane padding)
VMEM_LIMIT = 48 << 20   # 2x x-buffers + resident weight + outputs < 48 MiB < 64 MiB (v7x)


def stats_kernel(x_ref, o_ref, *, rows, row_tile, needs_mask):
    """Per-tile partial feature statistics.

    x_ref: (row_tile, 128*F) lane-dense view of 128*row_tile original rows.
    o_ref: (2, 128*F) partial [sum; sum_sq] for this tile; reduced across tiles
           and across the 128 lane-groups in the wrapper.
    Accumulation is f32 on the VPU (no MXU bf16 passes touch the statistics).
    """
    def write_stats(x):
        o_ref[0:1, :] = jnp.sum(x, axis=0, keepdims=True)
        o_ref[1:2, :] = jnp.sum(x * x, axis=0, keepdims=True)

    if needs_mask:
        j = pl.program_id(0)
        last = pl.num_programs(0) - 1

        @pl.when(j < last)
        def _full_tile():
            write_stats(x_ref[...])

        @pl.when(j == last)
        def _partial_tile():
            # Only the last block can contain out-of-bounds (garbage) rows;
            # only that tile pays for the iota/compare/select.
            row = jax.lax.broadcasted_iota(jnp.int32, (row_tile, 1), 0)
            valid = (j * row_tile + row) < rows
            write_stats(jnp.where(valid, x_ref[...], 0.0))
    else:
        write_stats(x_ref[...])


def apply_kernel(x_ref, w_ref, bias_ref, o_ref):
    """o = x @ W_blockdiag + bias : one MXU matmul per tile, lane-dense output."""
    o_ref[...] = (jnp.dot(x_ref[...], w_ref[...],
                          preferred_element_type=jnp.float32)
                  + bias_ref[0, 0])


def my_network_forward(x, gamma, beta, w, *, row_tile=DEFAULT_ROW_TILE):
    """MyNetwork.forward.

    x: (B, 42) f32.  gamma/beta: (42,) BatchNorm affine params.
    w: (1, 42) Linear weight (PyTorch layout).  Returns (B, 1) f32 using
    training-mode BatchNorm semantics (batch statistics, biased variance).
    """
    B, feat = x.shape
    assert feat == F

    # Pad the batch to a multiple of 128 so x can be viewed lane-dense.
    # Zero rows contribute nothing to the statistics (divisor is the true B)
    # and their outputs are sliced off at the end.
    Bp = ((B + LANES - 1) // LANES) * LANES
    if Bp != B:
        # TODO(synk): for very large non-128-aligned batches this pad is an
        # extra HBM pass over x; feed 128-aligned batches to avoid it.
        x = jnp.pad(x, ((0, Bp - B), (0, 0)))
    R = Bp // LANES
    xr = x.reshape(R, PACKED)            # free: contiguous row-major view

    if row_tile >= R:
        rt = R
    else:
        rt = max(8, (row_tile // 8) * 8)  # (8,128) rule on the 2nd-minor dim
        rt = min(rt, R)
    num_tiles = pl.cdiv(R, rt)
    needs_mask = (R % rt) != 0

    cparams = pltpu.CompilerParams(
        dimension_semantics=("parallel",),   # both passes shard across TCs (v7x)
        vmem_limit_bytes=VMEM_LIMIT)

    # ---- pass 1: stream x once, per-tile partial sums / sums of squares ----
    stats_partial = pl.pallas_call(
        functools.partial(stats_kernel, rows=R, row_tile=rt,
                          needs_mask=needs_mask),
        out_shape=jax.ShapeDtypeStruct((num_tiles, 2, PACKED), jnp.float32),
        grid_spec=pltpu.PrefetchScalarGridSpec(
            num_scalar_prefetch=0,
            grid=(num_tiles,),
            in_specs=[pl.BlockSpec((rt, PACKED), lambda j: (j, 0))],
            out_specs=pl.BlockSpec((None, 2, PACKED), lambda j: (j, 0, 0)),
        ),
        compiler_params=cparams,
    )(xr)

    # ---- fold (O(F) work, plain JAX): BN batch stats + linear weight ----
    stats = jnp.sum(stats_partial, axis=0)                     # (2, 128*F)
    sum_f = jnp.sum(stats[0].reshape(LANES, F), axis=0)         # (F,)
    sumsq_f = jnp.sum(stats[1].reshape(LANES, F), axis=0)       # (F,)
    inv_n = jnp.float32(1.0 / B)
    mean = sum_f * inv_n
    # One-pass biased variance E[x^2] - E[x]^2 (torch training-mode BN),
    # f32 throughout and clamped at 0 against cancellation.
    var = jnp.maximum(sumsq_f * inv_n - mean * mean, 0.0)
    scale = gamma.reshape(F) * jax.lax.rsqrt(var + EPS)
    w_vec = w.reshape(F).astype(jnp.float32)
    sw = scale * w_vec                                          # folded scale*w
    bias = jnp.dot(beta.reshape(F) - mean * scale, w_vec)       # folded scalar
    # Block-diagonal folded weight: (R, 128*F) @ (128*F, 128) -> (R, 128).
    # Column j holds sw for original row 128*r + j, so the per-tile matmul
    # produces a lane-dense output with no in-kernel relayout and no
    # per-row masked stores.
    w_big = jnp.kron(jnp.eye(LANES, dtype=jnp.float32), sw.reshape(F, 1))
    bias_arr = jnp.reshape(bias, (1, 1)).astype(jnp.float32)

    # ---- pass 2: stream x again, y = x @ W_big + bias ----
    out_r = pl.pallas_call(
        apply_kernel,
        out_shape=jax.ShapeDtypeStruct((R, LANES), jnp.float32),
        grid_spec=pltpu.PrefetchScalarGridSpec(
            num_scalar_prefetch=0,
            grid=(num_tiles,),
            in_specs=[
                pl.BlockSpec((rt, PACKED), lambda j: (j, 0)),       # x tile
                pl.BlockSpec((PACKED, LANES), lambda j: (0, 0)),    # resident W
                pl.BlockSpec(memory_space=pltpu.MemorySpace.SMEM),  # scalar bias
            ],
            out_specs=pl.BlockSpec((rt, LANES), lambda j: (j, 0)),
        ),
        compiler_params=cparams,
    )(xr, w_big, bias_arr)

    # (R, 128) row-major == (Bp, 1) row-major: free reshape, then drop padding.
    return out_r.reshape(Bp, 1)[:B]


def init_params(key):
    """Parameter init mirroring the PyTorch module's __init__."""
    gamma = jnp.ones((F,), dtype=jnp.float32)    # BatchNorm1d weight
    beta = jnp.zeros((F,), dtype=jnp.float32)    # BatchNorm1d bias
    # nn.init.xavier_uniform_ on a (1, 42) Linear weight: bound = sqrt(6/43).
    bound = (6.0 / (F + 1)) ** 0.5
    w = jax.random.uniform(key, (1, F), jnp.float32, -bound, bound)
    return gamma, beta, w


def _reference(x, gamma, beta, w):
    mean = jnp.mean(x, axis=0, keepdims=True)
    var = jnp.mean(jnp.square(x - mean), axis=0, keepdims=True)   # biased
    xn = (x - mean) * jax.lax.rsqrt(var + EPS) * gamma.reshape(1, F) \
         + beta.reshape(1, F)
    return xn @ w.reshape(1, F).T


if __name__ == "__main__":
    key = jax.random.PRNGKey(0)
    k_param, k_x1, k_x2, k_x3, k_g, k_b = jax.random.split(key, 6)
    gamma, beta, w = init_params(k_param)

    # Test 1: 128-aligned batch, single tile, PyTorch-default gamma/beta.
    x1 = jax.random.normal(k_x1, (256, F), dtype=jnp.float32)
    out1 = jax.block_until_ready(my_network_forward(x1, gamma, beta, w))
    ref1 = _reference(x1, gamma, beta, w)
    assert out1.shape == (256, 1)
    assert jnp.allclose(out1, ref1, atol=1e-4, rtol=1e-4), \
        float(jnp.max(jnp.abs(out1 - ref1)))

    # Test 2: unaligned batch (padding path) + multi-tile with a partial last
    # tile (masking path) + non-trivial gamma/beta (folded-bias path).
    gamma2 = 1.0 + 0.1 * jax.random.normal(k_g, (F,), dtype=jnp.float32)
    beta2 = 0.1 * jax.random.normal(k_b, (F,), dtype=jnp.float32)
    x2 = 2.0 + jax.random.normal(k_x2, (1300, F), dtype=jnp.float32)
    out2 = jax.block_until_ready(
        my_network_forward(x2, gamma2, beta2, w, row_tile=8))
    ref2 = _reference(x2, gamma2, beta2, w)
    assert out2.shape == (1300, 1)
    assert jnp.allclose(out2, ref2, atol=1e-4, rtol=1e-4), \
        float(jnp.max(jnp.abs(out2 - ref2)))

    # Test 3: tiny batch much smaller than one 128-row lane group.
    x3 = jax.random.normal(k_x3, (20, F), dtype=jnp.float32)
    out3 = jax.block_until_ready(my_network_forward(x3, gamma2, beta2, w))
    ref3 = _reference(x3, gamma2, beta2, w)
    assert out3.shape == (20, 1)
    assert jnp.allclose(out3, ref3, atol=1e-4, rtol=1e-4), \
        float(jnp.max(jnp.abs(out3 - ref3)))

    print("KERNEL_OK")
</pallas_src>

<mosaic_0001>
module attributes {stable_mosaic.version = 11 : i64} {
  func.func @stats_kernel(%arg0: i32, %arg1: memref<2x5376xf32, #tpu.memory_space<vmem>>, %arg2: memref<1x2x5376xf32, #tpu.memory_space<vmem>>) attributes {dimension_semantics = [#tpu.dimension_semantics<parallel>], iteration_bounds = array<i64: 1>, scalar_prefetch = 0 : i64, scratch_operands = 0 : i64, tpu.core_type = #tpu.core_type<tc>, window_params = [{transform_indices = @transform_0, window_bounds = array<i64: 2, 5376>}, {transform_indices = @transform_1, window_bounds = array<i64: 1, 2, 5376>}]} {
    %c0 = arith.constant 0 : index
    %c0_0 = arith.constant 0 : index
    %0 = vector.load %arg1[%c0, %c0_0] : memref<2x5376xf32, #tpu.memory_space<vmem>>, vector<2x5376xf32>
    %cst = arith.constant dense<0.000000e+00> : vector<5376xf32>
    %1 = vector.multi_reduction <add>, %0, %cst [0] : vector<2x5376xf32> to vector<5376xf32>
    %2 = vector.shape_cast %1 : vector<5376xf32> to vector<1x5376xf32>
    %c0_1 = arith.constant 0 : index
    %c0_2 = arith.constant 0 : index
    %c0_3 = arith.constant 0 : index
    %3 = vector.load %arg2[%c0_1, %c0_2, %c0_3] : memref<1x2x5376xf32, #tpu.memory_space<vmem>>, vector<1x1x5376xf32>
    %4 = vector.shape_cast %3 : vector<1x1x5376xf32> to vector<1x5376xf32>
    %5 = vector.shape_cast %2 : vector<1x5376xf32> to vector<1x1x5376xf32>
    tpu.vector_store %arg2[%c0_1, %c0_2, %c0_3], %5 {strides = array<i32>} : memref<1x2x5376xf32, #tpu.memory_space<vmem>>, vector<1x1x5376xf32>,
    %6 = arith.mulf %0, %0 : vector<2x5376xf32>
    %cst_4 = arith.constant dense<0.000000e+00> : vector<5376xf32>
    %7 = vector.multi_reduction <add>, %6, %cst_4 [0] : vector<2x5376xf32> to vector<5376xf32>
    %8 = vector.shape_cast %7 : vector<5376xf32> to vector<1x5376xf32>
    %c0_5 = arith.constant 0 : index
    %c1 = arith.constant 1 : index
    %c0_6 = arith.constant 0 : index
    %9 = vector.load %arg2[%c0_5, %c1, %c0_6] : memref<1x2x5376xf32, #tpu.memory_space<vmem>>, vector<1x1x5376xf32>
    %10 = vector.shape_cast %9 : vector<1x1x5376xf32> to vector<1x5376xf32>
    %11 = vector.shape_cast %8 : vector<1x5376xf32> to vector<1x1x5376xf32>
    tpu.vector_store %arg2[%c0_5, %c1, %c0_6], %11 {strides = array<i32>} : memref<1x2x5376xf32, #tpu.memory_space<vmem>>, vector<1x1x5376xf32>,
    return
  }
  func.func @transform_0(%arg0: i32) -> (i32, i32) {
    %c0_i32 = arith.constant 0 : i32
    %c0_i32_0 = arith.constant 0 : i32
    return %arg0, %c0_i32 : i32, i32
  }
  func.func @transform_1(%arg0: i32) -> (i32, i32, i32) {
    %c0_i32 = arith.constant 0 : i32
    %c0_i32_0 = arith.constant 0 : i32
    %c0_i32_1 = arith.constant 0 : i32
    return %arg0, %c0_i32, %c0_i32_0 : i32, i32, i32
  }
}

</mosaic_0001>

<llo_original>
// kernel: tpu_custom_call.1
$region0: #{tpu_custom_call.1}
  #allocation0 [shape = 'u32[]', space=smem, size = 0x4, offset = 0x4, fixed_abs, tag = 'smem constant byte address 0x4 - core index']
  #allocation1 [shape = 'u32[144,128]{1,0:T(1,128)}', space=vmem, size = 0x12000, scoped, tag = 'internal scratch']
  %s0 = inlined_call_operand.hbm [shape: f32[2,5376], index: 0, kind: input, shape index: {}]
  %s1 = inlined_call_operand.hbm [shape: f32[1,2,5376], index: 1, kind: output, shape index: {}]
  %s2 = sld [smem:[#allocation0]]
  $region18: #{tpu_custom_call.1} parent=0
    _
  %s4 = ssub.s32 1, %s2
  %s5 = scalar_select 0, %s4, %s2
  $region1: #{tpu_custom_call.1} parent=0
    #allocation2 [shape = 'u8[43008]{0}', space=vmem, size = 0xa800, scoped, tag = 'input window, operand 0, single buffered']
    #allocation3 [shape = 's32[1]{0}', space=sflag, size = 0x4, scoped, tag = 'scoped memory for tpu_custom_call.1']
    #allocation4 [shape = 's32[1]{0}', space=sflag, size = 0x4, scoped, tag = 'scoped memory for tpu_custom_call.1']
    #allocation5 [shape = 'u8[43008]{0}', space=vmem, size = 0xa800, scoped, tag = 'output window, operand 0, single buffered']
    %6 = vsyncpa [#allocation3], 0
    %7 = vsyncpa [#allocation4], 0
    // Predicated region
    $region2: #{tpu_custom_call.1} parent=1 // pred_check
      _
    $region3: #{tpu_custom_call.1} parent=1 // pred_check_branch
      %9 = sbr.rel (0) target = $region5
    $region4: #{tpu_custom_call.1} parent=1 // pred_region
      %s11 = ssub.s32 1344, 1344
      %12 = vsyncadd [#allocation3], %s11
      %s14 = sshll.u32 [#allocation2], 4
      %s15 = int_to_ptr.vmem [resolvable:$true] %s14
      %17 = dma.hbm_to_vmem [thread:$0]  %s0, 1344, %s15, [#allocation3]
    $region5: #{tpu_custom_call.1} parent=1 // pred_fallthru
      _
    // Predicated region
    $region6: #{tpu_custom_call.1} parent=1 // pred_check
      _
    $region7: #{tpu_custom_call.1} parent=1 // pred_check_branch
      %19 = sbr.rel (0) target = $region9
    $region8: #{tpu_custom_call.1} parent=1 // pred_region
      %20 = dma.done [#allocation3], 1344
    $region9: #{tpu_custom_call.1} parent=1 // pred_fallthru
      _
    %v21 = vld [vmem:[#allocation2] sm:$0xff]
    %v22 = vld [vmem:[#allocation2 + $0x8] sm:$0xff]
    %v23 = vld [vmem:[#allocation2 + $0x10] sm:$0xff]
    %v24 = vld [vmem:[#allocation2 + $0x18] sm:$0xff]
    %v25 = vld [vmem:[#allocation2 + $0x20] sm:$0xff]
    %v26 = vld [vmem:[#allocation2 + $0x28] sm:$0xff]
    %v27 = vld [vmem:[#allocation2 + $0x30] sm:$0xff]
    %v28 = vld [vmem:[#allocation2 + $0x38] sm:$0xff]
    %v29 = vld [vmem:[#allocation2 + $0x40] sm:$0xff]
    %v30 = vld [vmem:[#allocation2 + $0x48] sm:$0xff]
    %v31 = vld [vmem:[#allocation2 + $0x50] sm:$0xf]
    %v43 = vcombine.high %v21, %v21
    %v45 = vunpack.c.l.s4 1983009808
    %v46 = vunpack.c.0.s8 %v45
    %v47 = vlaneseq
    %v48 = vshrl.u32 %v47, 7
    %v49 = vsub.s32 %v46, %v48
    %v50 = vrot.slane %v21, %v49
    %v52 = vunpack.c.l.s4 1983009808
    %v53 = vunpack.c.0.s8 %v52
    %v54 = vlaneseq
    %v55 = vshrl.u32 %v54, 7
    %v56 = vsub.s32 %v53, %v55
    %v57 = vrot.slane %v43, %v56
    %v58 = vcombine.high %v50, %v50
    %v59 = vcombine.high %v57, %v57
    %v60 = vcombine.high %v22, %v22
    %v62 = vunpack.c.l.s4 1983009808
    %v63 = vunpack.c.0.s8 %v62
    %v64 = vlaneseq
    %v65 = vshrl.u32 %v64, 7
    %v66 = vsub.s32 %v63, %v65
    %v67 = vrot.slane %v22, %v66
    %v69 = vunpack.c.l.s4 1983009808
    %v70 = vunpack.c.0.s8 %v69
    %v71 = vlaneseq
    %v72 = vshrl.u32 %v71, 7
    %v73 = vsub.s32 %v70, %v72
    %v74 = vrot.slane %v60, %v73
    %v75 = vcombine.high %v67, %v67
    %v76 = vcombine.high %v74, %v74
    %v77 = vcombine.high %v23, %v23
    %v79 = vunpack.c.l.s4 1983009808
    %v80 = vunpack.c.0.s8 %v79
    %v81 = vlaneseq
    %v82 = vshrl.u32 %v81, 7
    %v83 = vsub.s32 %v80, %v82
    %v84 = vrot.slane %v23, %v83
    %v86 = vunpack.c.l.s4 1983009808
    %v87 = vunpack.c.0.s8 %v86
    %v88 = vlaneseq
    %v89 = vshrl.u32 %v88, 7
    %v90 = vsub.s32 %v87, %v89
    %v91 = vrot.slane %v77, %v90
    %v92 = vcombine.high %v84, %v84
    %v93 = vcombine.high %v91, %v91
    %v94 = vcombine.high %v24, %v24
    %v96 = vunpack.c.l.s4 1983009808
    %v97 = vunpack.c.0.s8 %v96
    %v98 = vlaneseq
    %v99 = vshrl.u32 %v98, 7
    %v100 = vsub.s32 %v97, %v99
    %v101 = vrot.slane %v24, %v100
    %v103 = vunpack.c.l.s4 1983009808
    %v104 = vunpack.c.0.s8 %v103
    %v105 = vlaneseq
    %v106 = vshrl.u32 %v105, 7
    %v107 = vsub.s32 %v104, %v106
    %v108 = vrot.slane %v94, %v107
    %v109 = vcombine.high %v101, %v101
    %v110 = vcombine.high %v108, %v108
    %v111 = vcombine.high %v25, %v25
    %v113 = vunpack.c.l.s4 1983009808
    %v114 = vunpack.c.0.s8 %v113
    %v115 = vlaneseq
    %v116 = vshrl.u32 %v115, 7
    %v117 = vsub.s32 %v114, %v116
    %v118 = vrot.slane %v25, %v117
    %v120 = vunpack.c.l.s4 1983009808
    %v121 = vunpack.c.0.s8 %v120
    %v122 = vlaneseq
    %v123 = vshrl.u32 %v122, 7
    %v124 = vsub.s32 %v121, %v123
    %v125 = vrot.slane %v111, %v124
    %v126 = vcombine.high %v118, %v118
    %v127 = vcombine.high %v125, %v125
    %v128 = vcombine.high %v26, %v26
    %v130 = vunpack.c.l.s4 1983009808
    %v131 = vunpack.c.0.s8 %v130
    %v132 = vlaneseq
    %v133 = vshrl.u32 %v132, 7
    %v134 = vsub.s32 %v131, %v133
    %v135 = vrot.slane %v26, %v134
    %v137 = vunpack.c.l.s4 1983009808
    %v138 = vunpack.c.0.s8 %v137
    %v139 = vlaneseq
    %v140 = vshrl.u32 %v139, 7
    %v141 = vsub.s32 %v138, %v140
    %v142 = vrot.slane %v128, %v141
    %v143 = vcombine.high %v135, %v135
    %v144 = vcombine.high %v142, %v142
    %v145 = vcombine.high %v27, %v27
    %v147 = vunpack.c.l.s4 1983009808
    %v148 = vunpack.c.0.s8 %v147
    %v149 = vlaneseq
    %v150 = vshrl.u32 %v149, 7
    %v151 = vsub.s32 %v148, %v150
    %v152 = vrot.slane %v27, %v151
    %v154 = vunpack.c.l.s4 1983009808
    %v155 = vunpack.c.0.s8 %v154
    %v156 = vlaneseq
    %v157 = vshrl.u32 %v156, 7
    %v158 = vsub.s32 %v155, %v157
    %v159 = vrot.slane %v145, %v158
    %v160 = vcombine.high %v152, %v152
    %v161 = vcombine.high %v159, %v159
    %v162 = vcombine.high %v28, %v28
    %v164 = vunpack.c.l.s4 1983009808
    %v165 = vunpack.c.0.s8 %v164
    %v166 = vlaneseq
    %v167 = vshrl.u32 %v166, 7
    %v168 = vsub.s32 %v165, %v167
    %v169 = vrot.slane %v28, %v168
    %v171 = vunpack.c.l.s4 1983009808
    %v172 = vunpack.c.0.s8 %v171
    %v173 = vlaneseq
    %v174 = vshrl.u32 %v173, 7
    %v175 = vsub.s32 %v172, %v174
    %v176 = vrot.slane %v162, %v175
    %v177 = vcombine.high %v169, %v169
    %v178 = vcombine.high %v176, %v176
    %v179 = vcombine.high %v29, %v29
    %v181 = vunpack.c.l.s4 1983009808
    %v182 = vunpack.c.0.s8 %v181
    %v183 = vlaneseq
    %v184 = vshrl.u32 %v183, 7
    %v185 = vsub.s32 %v182, %v184
    %v186 = vrot.slane %v29, %v185
    %v188 = vunpack.c.l.s4 1983009808
    %v189 = vunpack.c.0.s8 %v188
    %v190 = vlaneseq
    %v191 = vshrl.u32 %v190, 7
    %v192 = vsub.s32 %v189, %v191
    %v193 = vrot.slane %v179, %v192
    %v194 = vcombine.high %v186, %v186
    %v195 = vcombine.high %v193, %v193
    %v196 = vcombine.high %v30, %v30
    %v198 = vunpack.c.l.s4 1983009808
    %v199 = vunpack.c.0.s8 %v198
    %v200 = vlaneseq
    %v201 = vshrl.u32 %v200, 7
    %v202 = vsub.s32 %v199, %v201
    %v203 = vrot.slane %v30, %v202
    %v205 = vunpack.c.l.s4 1983009808
    %v206 = vunpack.c.0.s8 %v205
    %v207 = vlaneseq
    %v208 = vshrl.u32 %v207, 7
    %v209 = vsub.s32 %v206, %v208
    %v210 = vrot.slane %v196, %v209
    %v211 = vcombine.high %v203, %v203
    %v212 = vcombine.high %v210, %v210
    %v214 = vunpack.c.l.s4 1983009808
    %v215 = vunpack.c.0.s8 %v214
    %v216 = vlaneseq
    %v217 = vshrl.u32 %v216, 7
    %v218 = vsub.s32 %v215, %v217
    %v219 = vrot.slane %v31, %v218
    %v220 = vcombine.high %v219, %v219
    %vm263 = vcmask 1041408
    %v264 = vsel %vm263, %v50, 0.0
    %v265 = vrot.slane %v264, 4
    %v266 = vadd.f32 %v264, %v265
    %v267 = vrot.slane %v266, 2
    %v268 = vadd.f32 %v266, %v267
    %v269 = vrot.slane %v268, 1
    %v270 = vadd.f32 %v268, %v269
    %v271 = vsel %vm263, %v58, 0.0
    %v272 = vrot.slane %v271, 4
    %v273 = vadd.f32 %v271, %v272
    %v274 = vrot.slane %v273, 2
    %v275 = vadd.f32 %v273, %v274
    %v276 = vrot.slane %v275, 1
    %v277 = vadd.f32 %v275, %v276
    %v278 = vsel %vm263, %v57, 0.0
    %v279 = vrot.slane %v278, 4
    %v280 = vadd.f32 %v278, %v279
    %v281 = vrot.slane %v280, 2
    %v282 = vadd.f32 %v280, %v281
    %v283 = vrot.slane %v282, 1
    %v284 = vadd.f32 %v282, %v283
    %v285 = vsel %vm263, %v59, 0.0
    %v286 = vrot.slane %v285, 4
    %v287 = vadd.f32 %v285, %v286
    %v288 = vrot.slane %v287, 2
    %v289 = vadd.f32 %v287, %v288
    %v290 = vrot.slane %v289, 1
    %v291 = vadd.f32 %v289, %v290
    %v292 = vsel %vm263, %v67, 0.0
    %v293 = vrot.slane %v292, 4
    %v294 = vadd.f32 %v292, %v293
    %v295 = vrot.slane %v294, 2
    %v296 = vadd.f32 %v294, %v295
    %v297 = vrot.slane %v296, 1
    %v298 = vadd.f32 %v296, %v297
    %v299 = vsel %vm263, %v75, 0.0
    %v300 = vrot.slane %v299, 4
    %v301 = vadd.f32 %v299, %v300
    %v302 = vrot.slane %v301, 2
    %v303 = vadd.f32 %v301, %v302
    %v304 = vrot.slane %v303, 1
    %v305 = vadd.f32 %v303, %v304
    %v306 = vsel %vm263, %v74, 0.0
    %v307 = vrot.slane %v306, 4
    %v308 = vadd.f32 %v306, %v307
    %v309 = vrot.slane %v308, 2
    %v310 = vadd.f32 %v308, %v309
    %v311 = vrot.slane %v310, 1
    %v312 = vadd.f32 %v310, %v311
    %v313 = vsel %vm263, %v76, 0.0
    %v314 = vrot.slane %v313, 4
    %v315 = vadd.f32 %v313, %v314
    %v316 = vrot.slane %v315, 2
    %v317 = vadd.f32 %v315, %v316
    %v318 = vrot.slane %v317, 1
    %v319 = vadd.f32 %v317, %v318
    %v320 = vsel %vm263, %v84, 0.0
    %v321 = vrot.slane %v320, 4
    %v322 = vadd.f32 %v320, %v321
    %v323 = vrot.slane %v322, 2
    %v324 = vadd.f32 %v322, %v323
    %v325 = vrot.slane %v324, 1
    %v326 = vadd.f32 %v324, %v325
    %v327 = vsel %vm263, %v92, 0.0
    %v328 = vrot.slane %v327, 4
    %v329 = vadd.f32 %v327, %v328
    %v330 = vrot.slane %v329, 2
    %v331 = vadd.f32 %v329, %v330
    %v332 = vrot.slane %v331, 1
    %v333 = vadd.f32 %v331, %v332
    %v334 = vsel %vm263, %v91, 0.0
    %v335 = vrot.slane %v334, 4
    %v336 = vadd.f32 %v334, %v335
    %v337 = vrot.slane %v336, 2
    %v338 = vadd.f32 %v336, %v337
    %v339 = vrot.slane %v338, 1
    %v340 = vadd.f32 %v338, %v339
    %v341 = vsel %vm263, %v93, 0.0
    %v342 = vrot.slane %v341, 4
    %v343 = vadd.f32 %v341, %v342
    %v344 = vrot.slane %v343, 2
    %v345 = vadd.f32 %v343, %v344
    %v346 = vrot.slane %v345, 1
    %v347 = vadd.f32 %v345, %v346
    %v348 = vsel %vm263, %v101, 0.0
    %v349 = vrot.slane %v348, 4
    %v350 = vadd.f32 %v348, %v349
    %v351 = vrot.slane %v350, 2
    %v352 = vadd.f32 %v350, %v351
    %v353 = vrot.slane %v352, 1
    %v354 = vadd.f32 %v352, %v353
    %v355 = vsel %vm263, %v109, 0.0
    %v356 = vrot.slane %v355, 4
    %v357 = vadd.f32 %v355, %v356
    %v358 = vrot.slane %v357, 2
    %v359 = vadd.f32 %v357, %v358
    %v360 = vrot.slane %v359, 1
    %v361 = vadd.f32 %v359, %v360
    %v362 = vsel %vm263, %v108, 0.0
    %v363 = vrot.slane %v362, 4
    %v364 = vadd.f32 %v362, %v363
    %v365 = vrot.slane %v364, 2
    %v366 = vadd.f32 %v364, %v365
    %v367 = vrot.slane %v366, 1
    %v368 = vadd.f32 %v366, %v367
    %v369 = vsel %vm263, %v110, 0.0
    %v370 = vrot.slane %v369, 4
    %v371 = vadd.f32 %v369, %v370
    %v372 = vrot.slane %v371, 2
    %v373 = vadd.f32 %v371, %v372
    %v374 = vrot.slane %v373, 1
    %v375 = vadd.f32 %v373, %v374
    %v376 = vsel %vm263, %v118, 0.0
    %v377 = vrot.slane %v376, 4
    %v378 = vadd.f32 %v376, %v377
    %v379 = vrot.slane %v378, 2
    %v380 = vadd.f32 %v378, %v379
    %v381 = vrot.slane %v380, 1
    %v382 = vadd.f32 %v380, %v381
    %v383 = vsel %vm263, %v126, 0.0
    %v384 = vrot.slane %v383, 4
    %v385 = vadd.f32 %v383, %v384
    %v386 = vrot.slane %v385, 2
    %v387 = vadd.f32 %v385, %v386
    %v388 = vrot.slane %v387, 1
    %v389 = vadd.f32 %v387, %v388
    %v390 = vsel %vm263, %v125, 0.0
    %v391 = vrot.slane %v390, 4
    %v392 = vadd.f32 %v390, %v391
    %v393 = vrot.slane %v392, 2
    %v394 = vadd.f32 %v392, %v393
    %v395 = vrot.slane %v394, 1
    %v396 = vadd.f32 %v394, %v395
    %v397 = vsel %vm263, %v127, 0.0
    %v398 = vrot.slane %v397, 4
    %v399 = vadd.f32 %v397, %v398
    %v400 = vrot.slane %v399, 2
    %v401 = vadd.f32 %v399, %v400
    %v402 = vrot.slane %v401, 1
    %v403 = vadd.f32 %v401, %v402
    %v404 = vsel %vm263, %v135, 0.0
    %v405 = vrot.slane %v404, 4
    %v406 = vadd.f32 %v404, %v405
    %v407 = vrot.slane %v406, 2
    %v408 = vadd.f32 %v406, %v407
    %v409 = vrot.slane %v408, 1
    %v410 = vadd.f32 %v408, %v409
    %v411 = vsel %vm263, %v143, 0.0
    %v412 = vrot.slane %v411, 4
    %v413 = vadd.f32 %v411, %v412
    %v414 = vrot.slane %v413, 2
    %v415 = vadd.f32 %v413, %v414
    %v416 = vrot.slane %v415, 1
    %v417 = vadd.f32 %v415, %v416
    %v418 = vsel %vm263, %v142, 0.0
    %v419 = vrot.slane %v418, 4
    %v420 = vadd.f32 %v418, %v419
    %v421 = vrot.slane %v420, 2
    %v422 = vadd.f32 %v420, %v421
    %v423 = vrot.slane %v422, 1
    %v424 = vadd.f32 %v422, %v423
    %v425 = vsel %vm263, %v144, 0.0
    %v426 = vrot.slane %v425, 4
    %v427 = vadd.f32 %v425, %v426
    %v428 = vrot.slane %v427, 2
    %v429 = vadd.f32 %v427, %v428
    %v430 = vrot.slane %v429, 1
    %v431 = vadd.f32 %v429, %v430
    %v432 = vsel %vm263, %v152, 0.0
    %v433 = vrot.slane %v432, 4
    %v434 = vadd.f32 %v432, %v433
    %v435 = vrot.slane %v434, 2
    %v436 = vadd.f32 %v434, %v435
    %v437 = vrot.slane %v436, 1
    %v438 = vadd.f32 %v436, %v437
    %v439 = vsel %vm263, %v160, 0.0
    %v440 = vrot.slane %v439, 4
    %v441 = vadd.f32 %v439, %v440
    %v442 = vrot.slane %v441, 2
    %v443 = vadd.f32 %v441, %v442
    %v444 = vrot.slane %v443, 1
    %v445 = vadd.f32 %v443, %v444
    %v446 = vsel %vm263, %v159, 0.0
    %v447 = vrot.slane %v446, 4
    %v448 = vadd.f32 %v446, %v447
    %v449 = vrot.slane %v448, 2
    %v450 = vadd.f32 %v448, %v449
    %v451 = vrot.slane %v450, 1
    %v452 = vadd.f32 %v450, %v451
    %v453 = vsel %vm263, %v161, 0.0
    %v454 = vrot.slane %v453, 4
    %v455 = vadd.f32 %v453, %v454
    %v456 = vrot.slane %v455, 2
    %v457 = vadd.f32 %v455, %v456
    %v458 = vrot.slane %v457, 1
    %v459 = vadd.f32 %v457, %v458
    %v460 = vsel %vm263, %v169, 0.0
    %v461 = vrot.slane %v460, 4
    %v462 = vadd.f32 %v460, %v461
    %v463 = vrot.slane %v462, 2
    %v464 = vadd.f32 %v462, %v463
    %v465 = vrot.slane %v464, 1
    %v466 = vadd.f32 %v464, %v465
    %v467 = vsel %vm263, %v177, 0.0
    %v468 = vrot.slane %v467, 4
    %v469 = vadd.f32 %v467, %v468
    %v470 = vrot.slane %v469, 2
    %v471 = vadd.f32 %v469, %v470
    %v472 = vrot.slane %v471, 1
    %v473 = vadd.f32 %v471, %v472
    %v474 = vsel %vm263, %v176, 0.0
    %v475 = vrot.slane %v474, 4
    %v476 = vadd.f32 %v474, %v475
    %v477 = vrot.slane %v476, 2
    %v478 = vadd.f32 %v476, %v477
    %v479 = vrot.slane %v478, 1
    %v480 = vadd.f32 %v478, %v479
    %v481 = vsel %vm263, %v178, 0.0
    %v482 = vrot.slane %v481, 4
    %v483 = vadd.f32 %v481, %v482
    %v484 = vrot.slane %v483, 2
    %v485 = vadd.f32 %v483, %v484
    %v486 = vrot.slane %v485, 1
    %v487 = vadd.f32 %v485, %v486
    %v488 = vsel %vm263, %v186, 0.0
    %v489 = vrot.slane %v488, 4
    %v490 = vadd.f32 %v488, %v489
    %v491 = vrot.slane %v490, 2
    %v492 = vadd.f32 %v490, %v491
    %v493 = vrot.slane %v492, 1
    %v494 = vadd.f32 %v492, %v493
    %v495 = vsel %vm263, %v194, 0.0
    %v496 = vrot.slane %v495, 4
    %v497 = vadd.f32 %v495, %v496
    %v498 = vrot.slane %v497, 2
    %v499 = vadd.f32 %v497, %v498
    %v500 = vrot.slane %v499, 1
    %v501 = vadd.f32 %v499, %v500
    %v502 = vsel %vm263, %v193, 0.0
    %v503 = vrot.slane %v502, 4
    %v504 = vadd.f32 %v502, %v503
    %v505 = vrot.slane %v504, 2
    %v506 = vadd.f32 %v504, %v505
    %v507 = vrot.slane %v506, 1
    %v508 = vadd.f32 %v506, %v507
    %v509 = vsel %vm263, %v195, 0.0
    %v510 = vrot.slane %v509, 4
    %v511 = vadd.f32 %v509, %v510
    %v512 = vrot.slane %v511, 2
    %v513 = vadd.f32 %v511, %v512
    %v514 = vrot.slane %v513, 1
    %v515 = vadd.f32 %v513, %v514
    %v516 = vsel %vm263, %v203, 0.0
    %v517 = vrot.slane %v516, 4
    %v518 = vadd.f32 %v516, %v517
    %v519 = vrot.slane %v518, 2
    %v520 = vadd.f32 %v518, %v519
    %v521 = vrot.slane %v520, 1
    %v522 = vadd.f32 %v520, %v521
    %v523 = vsel %vm263, %v211, 0.0
    %v524 = vrot.slane %v523, 4
    %v525 = vadd.f32 %v523, %v524
    %v526 = vrot.slane %v525, 2
    %v527 = vadd.f32 %v525, %v526
    %v528 = vrot.slane %v527, 1
    %v529 = vadd.f32 %v527, %v528
    %v530 = vsel %vm263, %v210, 0.0
    %v531 = vrot.slane %v530, 4
    %v532 = vadd.f32 %v530, %v531
    %v533 = vrot.slane %v532, 2
    %v534 = vadd.f32 %v532, %v533
    %v535 = vrot.slane %v534, 1
    %v536 = vadd.f32 %v534, %v535
    %v537 = vsel %vm263, %v212, 0.0
    %v538 = vrot.slane %v537, 4
    %v539 = vadd.f32 %v537, %v538
    %v540 = vrot.slane %v539, 2
    %v541 = vadd.f32 %v539, %v540
    %v542 = vrot.slane %v541, 1
    %v543 = vadd.f32 %v541, %v542
    %v544 = vsel %vm263, %v219, 0.0
    %v545 = vrot.slane %v544, 4
    %v546 = vadd.f32 %v544, %v545
    %v547 = vrot.slane %v546, 2
    %v548 = vadd.f32 %v546, %v547
    %v549 = vrot.slane %v548, 1
    %v550 = vadd.f32 %v548, %v549
    %v551 = vsel %vm263, %v220, 0.0
    %v552 = vrot.slane %v551, 4
    %v553 = vadd.f32 %v551, %v552
    %v554 = vrot.slane %v553, 2
    %v555 = vadd.f32 %v553, %v554
    %v556 = vrot.slane %v555, 1
    %v557 = vadd.f32 %v555, %v556
    %v600 = vcombine.low %v270, %v277
    %v601 = vcombine.low %v284, %v291
    %v602 = vcombine.low %v298, %v305
    %v603 = vcombine.low %v312, %v319
    %v605 = vunpack.c.l.s4 1966171168
    %v606 = vunpack.c.0.s8 %v605
    %v607 = vlaneseq
    %v608 = vshrl.u32 %v607, 7
    %v609 = vsub.s32 %v606, %v608
    %v610 = vrot.slane %v600, %v609
    %v612 = vunpack.c.l.s4 1966171168
    %v613 = vunpack.c.0.s8 %v612
    %v614 = vlaneseq
    %v615 = vshrl.u32 %v614, 7
    %v616 = vsub.s32 %v613, %v615
    %v617 = vrot.slane %v601, %v616
    %v619 = vunpack.c.l.s4 1966171168
    %v620 = vunpack.c.0.s8 %v619
    %v621 = vlaneseq
    %v622 = vshrl.u32 %v621, 7
    %v623 = vsub.s32 %v620, %v622
    %v624 = vrot.slane %v602, %v623
    %v626 = vunpack.c.l.s4 1966171168
    %v627 = vunpack.c.0.s8 %v626
    %v628 = vlaneseq
    %v629 = vshrl.u32 %v628, 7
    %v630 = vsub.s32 %v627, %v629
    %v631 = vrot.slane %v603, %v630
    %v632 = vcombine.low %v610, %v617
    %v633 = vcombine.low %v624, %v631
    %v635 = vunpack.c.l.s4 1966171168
    %v636 = vunpack.c.0.s8 %v635
    %v637 = vlaneseq
    %v638 = vshrl.u32 %v637, 7
    %v639 = vsub.s32 %v636, %v638
    %v640 = vrot.slane %v632, %v639
    %v642 = vunpack.c.l.s4 1966171168
    %v643 = vunpack.c.0.s8 %v642
    %v644 = vlaneseq
    %v645 = vshrl.u32 %v644, 7
    %v646 = vsub.s32 %v643, %v645
    %v647 = vrot.slane %v633, %v646
    %v648 = vcombine.low %v640, %v647
    %v649 = vcombine.low %v326, %v333
    %v650 = vcombine.low %v340, %v347
    %v651 = vcombine.low %v354, %v361
    %v652 = vcombine.low %v368, %v375
    %v654 = vunpack.c.l.s4 1966171168
    %v655 = vunpack.c.0.s8 %v654
    %v656 = vlaneseq
    %v657 = vshrl.u32 %v656, 7
    %v658 = vsub.s32 %v655, %v657
    %v659 = vrot.slane %v649, %v658
    %v661 = vunpack.c.l.s4 1966171168
    %v662 = vunpack.c.0.s8 %v661
    %v663 = vlaneseq
    %v664 = vshrl.u32 %v663, 7
    %v665 = vsub.s32 %v662, %v664
    %v666 = vrot.slane %v650, %v665
    %v668 = vunpack.c.l.s4 1966171168
    %v669 = vunpack.c.0.s8 %v668
    %v670 = vlaneseq
    %v671 = vshrl.u32 %v670, 7
    %v672 = vsub.s32 %v669, %v671
    %v673 = vrot.slane %v651, %v672
    %v675 = vunpack.c.l.s4 1966171168
    %v676 = vunpack.c.0.s8 %v675
    %v677 = vlaneseq
    %v678 = vshrl.u32 %v677, 7
    %v679 = vsub.s32 %v676, %v678
    %v680 = vrot.slane %v652, %v679
    %v681 = vcombine.low %v659, %v666
    %v682 = vcombine.low %v673, %v680
    %v684 = vunpack.c.l.s4 1966171168
    %v685 = vunpack.c.0.s8 %v684
    %v686 = vlaneseq
    %v687 = vshrl.u32 %v686, 7
    %v688 = vsub.s32 %v685, %v687
    %v689 = vrot.slane %v681, %v688
    %v691 = vunpack.c.l.s4 1966171168
    %v692 = vunpack.c.0.s8 %v691
    %v693 = vlaneseq
    %v694 = vshrl.u32 %v693, 7
    %v695 = vsub.s32 %v692, %v694
    %v696 = vrot.slane %v682, %v695
    %v697 = vcombine.low %v689, %v696
    %v698 = vcombine.low %v382, %v389
    %v699 = vcombine.low %v396, %v403
    %v700 = vcombine.low %v410, %v417
    %v701 = vcombine.low %v424, %v431
    %v703 = vunpack.c.l.s4 1966171168
    %v704 = vunpack.c.0.s8 %v703
    %v705 = vlaneseq
    %v706 = vshrl.u32 %v705, 7
    %v707 = vsub.s32 %v704, %v706
    %v708 = vrot.slane %v698, %v707
    %v710 = vunpack.c.l.s4 1966171168
    %v711 = vunpack.c.0.s8 %v710
    %v712 = vlaneseq
    %v713 = vshrl.u32 %v712, 7
    %v714 = vsub.s32 %v711, %v713
    %v715 = vrot.slane %v699, %v714
    %v717 = vunpack.c.l.s4 1966171168
    %v718 = vunpack.c.0.s8 %v717
    %v719 = vlaneseq
    %v720 = vshrl.u32 %v719, 7
    %v721 = vsub.s32 %v718, %v720
    %v722 = vrot.slane %v700, %v721
    %v724 = vunpack.c.l.s4 1966171168
    %v725 = vunpack.c.0.s8 %v724
    %v726 = vlaneseq
    %v727 = vshrl.u32 %v726, 7
    %v728 = vsub.s32 %v725, %v727
    %v729 = vrot.slane %v701, %v728
    %v730 = vcombine.low %v708, %v715
    %v731 = vcombine.low %v722, %v729
    %v733 = vunpack.c.l.s4 1966171168
    %v734 = vunpack.c.0.s8 %v733
    %v735 = vlaneseq
    %v736 = vshrl.u32 %v735, 7
    %v737 = vsub.s32 %v734, %v736
    %v738 = vrot.slane %v730, %v737
    %v740 = vunpack.c.l.s4 1966171168
    %v741 = vunpack.c.0.s8 %v740
    %v742 = vlaneseq
    %v743 = vshrl.u32 %v742, 7
    %v744 = vsub.s32 %v741, %v743
    %v745 = vrot.slane %v731, %v744
    %v746 = vcombine.low %v738, %v745
    %v747 = vcombine.low %v438, %v445
    %v748 = vcombine.low %v452, %v459
    %v749 = vcombine.low %v466, %v473
    %v750 = vcombine.low %v480, %v487
    %v752 = vunpack.c.l.s4 1966171168
    %v753 = vunpack.c.0.s8 %v752
    %v754 = vlaneseq
    %v755 = vshrl.u32 %v754, 7
    %v756 = vsub.s32 %v753, %v755
    %v757 = vrot.slane %v747, %v756
    %v759 = vunpack.c.l.s4 1966171168
    %v760 = vunpack.c.0.s8 %v759
    %v761 = vlaneseq
    %v762 = vshrl.u32 %v761, 7
    %v763 = vsub.s32 %v760, %v762
    %v764 = vrot.slane %v748, %v763
    %v766 = vunpack.c.l.s4 1966171168
    %v767 = vunpack.c.0.s8 %v766
    %v768 = vlaneseq
    %v769 = vshrl.u32 %v768, 7
    %v770 = vsub.s32 %v767, %v769
    %v771 = vrot.slane %v749, %v770
    %v773 = vunpack.c.l.s4 1966171168
    %v774 = vunpack.c.0.s8 %v773
    %v775 = vlaneseq
    %v776 = vshrl.u32 %v775, 7
    %v777 = vsub.s32 %v774, %v776
    %v778 = vrot.slane %v750, %v777
    %v779 = vcombine.low %v757, %v764
    %v780 = vcombine.low %v771, %v778
    %v782 = vunpack.c.l.s4 1966171168
    %v783 = vunpack.c.0.s8 %v782
    %v784 = vlaneseq
    %v785 = vshrl.u32 %v784, 7
    %v786 = vsub.s32 %v783, %v785
    %v787 = vrot.slane %v779, %v786
    %v789 = vunpack.c.l.s4 1966171168
    %v790 = vunpack.c.0.s8 %v789
    %v791 = vlaneseq
    %v792 = vshrl.u32 %v791, 7
    %v793 = vsub.s32 %v790, %v792
    %v794 = vrot.slane %v780, %v793
    %v795 = vcombine.low %v787, %v794
    %v796 = vcombine.low %v494, %v501
    %v797 = vcombine.low %v508, %v515
    %v798 = vcombine.low %v522, %v529
    %v799 = vcombine.low %v536, %v543
    %v801 = vunpack.c.l.s4 1966171168
    %v802 = vunpack.c.0.s8 %v801
    %v803 = vlaneseq
    %v804 = vshrl.u32 %v803, 7
    %v805 = vsub.s32 %v802, %v804
    %v806 = vrot.slane %v796, %v805
    %v808 = vunpack.c.l.s4 1966171168
    %v809 = vunpack.c.0.s8 %v808
    %v810 = vlaneseq
    %v811 = vshrl.u32 %v810, 7
    %v812 = vsub.s32 %v809, %v811
    %v813 = vrot.slane %v797, %v812
    %v815 = vunpack.c.l.s4 1966171168
    %v816 = vunpack.c.0.s8 %v815
    %v817 = vlaneseq
    %v818 = vshrl.u32 %v817, 7
    %v819 = vsub.s32 %v816, %v818
    %v820 = vrot.slane %v798, %v819
    %v822 = vunpack.c.l.s4 1966171168
    %v823 = vunpack.c.0.s8 %v822
    %v824 = vlaneseq
    %v825 = vshrl.u32 %v824, 7
    %v826 = vsub.s32 %v823, %v825
    %v827 = vrot.slane %v799, %v826
    %v828 = vcombine.low %v806, %v813
    %v829 = vcombine.low %v820, %v827
    %v831 = vunpack.c.l.s4 1966171168
    %v832 = vunpack.c.0.s8 %v831
    %v833 = vlaneseq
    %v834 = vshrl.u32 %v833, 7
    %v835 = vsub.s32 %v832, %v834
    %v836 = vrot.slane %v828, %v835
    %v838 = vunpack.c.l.s4 1966171168
    %v839 = vunpack.c.0.s8 %v838
    %v840 = vlaneseq
    %v841 = vshrl.u32 %v840, 7
    %v842 = vsub.s32 %v839, %v841
    %v843 = vrot.slane %v829, %v842
    %v844 = vcombine.low %v836, %v843
    %v845 = vcombine.low %v550, %v557
    %v847 = vunpack.c.l.s4 1966171168
    %v848 = vunpack.c.0.s8 %v847
    %v849 = vlaneseq
    %v850 = vshrl.u32 %v849, 7
    %v851 = vsub.s32 %v848, %v850
    %v852 = vrot.slane %v845, %v851
    %v854 = vunpack.c.l.s4 1966171168
    %v855 = vunpack.c.0.s8 %v854
    %v856 = vlaneseq
    %v857 = vshrl.u32 %v856, 7
    %v858 = vsub.s32 %v855, %v857
    %v859 = vrot.slane %v852, %v858
    %866 = vst [vmem:[#allocation5] ss:$2 sm:$0xff] %v648
    %s867 = scalar_lea.vmem [#allocation5], 16
    %868 = vst [vmem:[%s867] ss:$2 sm:$0xff] %v697
    %s869 = scalar_lea.vmem [#allocation5], 32
    %870 = vst [vmem:[%s869] ss:$2 sm:$0xff] %v746
    %s871 = scalar_lea.vmem [#allocation5], 48
    %872 = vst [vmem:[%s871] ss:$2 sm:$0xff] %v795
    %s873 = scalar_lea.vmem [#allocation5], 64
    %874 = vst [vmem:[%s873] ss:$2 sm:$0xff] %v844
    %v875 = vlaneseq
    %vm876 = vcmp.ge.s32.totalorder %v875, 0
    %vm877 = vcmp.lt.s32.totalorder %v875, 256
    %vm878 = vmand %vm876, %vm877
    %s879 = scalar_lea.vmem [#allocation5], 80
    %880 = vst.msk [vmem:[%s879] ss:$2 sm:$0x3] %vm878, %v859
    %v881 = vmul.f32 %v21, %v21
    %v882 = vmul.f32 %v22, %v22
    %v883 = vmul.f32 %v23, %v23
    %v884 = vmul.f32 %v24, %v24
    %v885 = vmul.f32 %v25, %v25
    %v886 = vmul.f32 %v26, %v26
    %v887 = vmul.f32 %v27, %v27
    %v888 = vmul.f32 %v28, %v28
    %v889 = vmul.f32 %v29, %v29
    %v890 = vmul.f32 %v30, %v30
    %v891 = vmul.f32 %v31, %v31
    %v903 = vcombine.high %v881, %v881
    %v905 = vunpack.c.l.s4 1983009808
    %v906 = vunpack.c.0.s8 %v905
    %v907 = vlaneseq
    %v908 = vshrl.u32 %v907, 7
    %v909 = vsub.s32 %v906, %v908
    %v910 = vrot.slane %v881, %v909
    %v912 = vunpack.c.l.s4 1983009808
    %v913 = vunpack.c.0.s8 %v912
    %v914 = vlaneseq
    %v915 = vshrl.u32 %v914, 7
    %v916 = vsub.s32 %v913, %v915
    %v917 = vrot.slane %v903, %v916
    %v918 = vcombine.high %v910, %v910
    %v919 = vcombine.high %v917, %v917
    %v920 = vcombine.high %v882, %v882
    %v922 = vunpack.c.l.s4 1983009808
    %v923 = vunpack.c.0.s8 %v922
    %v924 = vlaneseq
    %v925 = vshrl.u32 %v924, 7
    %v926 = vsub.s32 %v923, %v925
    %v927 = vrot.slane %v882, %v926
    %v929 = vunpack.c.l.s4 1983009808
    %v930 = vunpack.c.0.s8 %v929
    %v931 = vlaneseq
    %v932 = vshrl.u32 %v931, 7
    %v933 = vsub.s32 %v930, %v932
    %v934 = vrot.slane %v920, %v933
    %v935 = vcombine.high %v927, %v927
    %v936 = vcombine.high %v934, %v934
    %v937 = vcombine.high %v883, %v883
    %v939 = vunpack.c.l.s4 1983009808
    %v940 = vunpack.c.0.s8 %v939
    %v941 = vlaneseq
    %v942 = vshrl.u32 %v941, 7
    %v943 = vsub.s32 %v940, %v942
    %v944 = vrot.slane %v883, %v943
    %v946 = vunpack.c.l.s4 1983009808
    %v947 = vunpack.c.0.s8 %v946
    %v948 = vlaneseq
    %v949 = vshrl.u32 %v948, 7
    %v950 = vsub.s32 %v947, %v949
    %v951 = vrot.slane %v937, %v950
    %v952 = vcombine.high %v944, %v944
    %v953 = vcombine.high %v951, %v951
    %v954 = vcombine.high %v884, %v884
    %v956 = vunpack.c.l.s4 1983009808
    %v957 = vunpack.c.0.s8 %v956
    %v958 = vlaneseq
    %v959 = vshrl.u32 %v958, 7
    %v960 = vsub.s32 %v957, %v959
    %v961 = vrot.slane %v884, %v960
    %v963 = vunpack.c.l.s4 1983009808
    %v964 = vunpack.c.0.s8 %v963
    %v965 = vlaneseq
    %v966 = vshrl.u32 %v965, 7
    %v967 = vsub.s32 %v964, %v966
    %v968 = vrot.slane %v954, %v967
    %v969 = vcombine.high %v961, %v961
    %v970 = vcombine.high %v968, %v968
    %v971 = vcombine.high %v885, %v885
    %v973 = vunpack.c.l.s4 1983009808
    %v974 = vunpack.c.0.s8 %v973
    %v975 = vlaneseq
    %v976 = vshrl.u32 %v975, 7
    %v977 = vsub.s32 %v974, %v976
    %v978 = vrot.slane %v885, %v977
    %v980 = vunpack.c.l.s4 1983009808
    %v981 = vunpack.c.0.s8 %v980
    %v982 = vlaneseq
    %v983 = vshrl.u32 %v982, 7
    %v984 = vsub.s32 %v981, %v983
    %v985 = vrot.slane %v971, %v984
    %v986 = vcombine.high %v978, %v978
    %v987 = vcombine.high %v985, %v985
    %v988 = vcombine.high %v886, %v886
    %v990 = vunpack.c.l.s4 1983009808
    %v991 = vunpack.c.0.s8 %v990
    %v992 = vlaneseq
    %v993 = vshrl.u32 %v992, 7
    %v994 = vsub.s32 %v991, %v993
    %v995 = vrot.slane %v886, %v994
    %v997 = vunpack.c.l.s4 1983009808
    %v998 = vunpack.c.0.s8 %v997
    %v999 = vlaneseq
    %v1000 = vshrl.u32 %v999, 7
    %v1001 = vsub.s32 %v998, %v1000
    %v1002 = vrot.slane %v988, %v1001
    %v1003 = vcombine.high %v995, %v995
    %v1004 = vcombine.high %v1002, %v1002
    %v1005 = vcombine.high %v887, %v887
    %v1007 = vunpack.c.l.s4 1983009808
    %v1008 = vunpack.c.0.s8 %v1007
    %v1009 = vlaneseq
    %v1010 = vshrl.u32 %v1009, 7
    %v1011 = vsub.s32 %v1008, %v1010
    %v1012 = vrot.slane %v887, %v1011
    %v1014 = vunpack.c.l.s4 1983009808
    %v1015 = vunpack.c.0.s8 %v1014
    %v1016 = vlaneseq
    %v1017 = vshrl.u32 %v1016, 7
    %v1018 = vsub.s32 %v1015, %v1017
    %v1019 = vrot.slane %v1005, %v1018
    %v1020 = vcombine.high %v1012, %v1012
    %v1021 = vcombine.high %v1019, %v1019
    %v1022 = vcombine.high %v888, %v888
    %v1024 = vunpack.c.l.s4 1983009808
    %v1025 = vunpack.c.0.s8 %v1024
    %v1026 = vlaneseq
    %v1027 = vshrl.u32 %v1026, 7
    %v1028 = vsub.s32 %v1025, %v1027
    %v1029 = vrot.slane %v888, %v1028
    %v1031 = vunpack.c.l.s4 1983009808
    %v1032 = vunpack.c.0.s8 %v1031
    %v1033 = vlaneseq
    %v1034 = vshrl.u32 %v1033, 7
    %v1035 = vsub.s32 %v1032, %v1034
    %v1036 = vrot.slane %v1022, %v1035
    %v1037 = vcombine.high %v1029, %v1029
    %v1038 = vcombine.high %v1036, %v1036
    %v1039 = vcombine.high %v889, %v889
    %v1041 = vunpack.c.l.s4 1983009808
    %v1042 = vunpack.c.0.s8 %v1041
    %v1043 = vlaneseq
    %v1044 = vshrl.u32 %v1043, 7
    %v1045 = vsub.s32 %v1042, %v1044
    %v1046 = vrot.slane %v889, %v1045
    %v1048 = vunpack.c.l.s4 1983009808
    %v1049 = vunpack.c.0.s8 %v1048
    %v1050 = vlaneseq
    %v1051 = vshrl.u32 %v1050, 7
    %v1052 = vsub.s32 %v1049, %v1051
    %v1053 = vrot.slane %v1039, %v1052
    %v1054 = vcombine.high %v1046, %v1046
    %v1055 = vcombine.high %v1053, %v1053
    %v1056 = vcombine.high %v890, %v890
    %v1058 = vunpack.c.l.s4 1983009808
    %v1059 = vunpack.c.0.s8 %v1058
    %v1060 = vlaneseq
    %v1061 = vshrl.u32 %v1060, 7
    %v1062 = vsub.s32 %v1059, %v1061
    %v1063 = vrot.slane %v890, %v1062
    %v1065 = vunpack.c.l.s4 1983009808
    %v1066 = vunpack.c.0.s8 %v1065
    %v1067 = vlaneseq
    %v1068 = vshrl.u32 %v1067, 7
    %v1069 = vsub.s32 %v1066, %v1068
    %v1070 = vrot.slane %v1056, %v1069
    %v1071 = vcombine.high %v1063, %v1063
    %v1072 = vcombine.high %v1070, %v1070
    %v1074 = vunpack.c.l.s4 1983009808
    %v1075 = vunpack.c.0.s8 %v1074
    %v1076 = vlaneseq
    %v1077 = vshrl.u32 %v1076, 7
    %v1078 = vsub.s32 %v1075, %v1077
    %v1079 = vrot.slane %v891, %v1078
    %v1080 = vcombine.high %v1079, %v1079
    %v1123 = vsel %vm263, %v910, 0.0
    %v1124 = vrot.slane %v1123, 4
    %v1125 = vadd.f32 %v1123, %v1124
    %v1126 = vrot.slane %v1125, 2
    %v1127 = vadd.f32 %v1125, %v1126
    %v1128 = vrot.slane %v1127, 1
    %v1129 = vadd.f32 %v1127, %v1128
    %v1130 = vsel %vm263, %v918, 0.0
    %v1131 = vrot.slane %v1130, 4
    %v1132 = vadd.f32 %v1130, %v1131
    %v1133 = vrot.slane %v1132, 2
    %v1134 = vadd.f32 %v1132, %v1133
    %v1135 = vrot.slane %v1134, 1
    %v1136 = vadd.f32 %v1134, %v1135
    %v1137 = vsel %vm263, %v917, 0.0
    %v1138 = vrot.slane %v1137, 4
    %v1139 = vadd.f32 %v1137, %v1138
    %v1140 = vrot.slane %v1139, 2
    %v1141 = vadd.f32 %v1139, %v1140
    %v1142 = vrot.slane %v1141, 1
    %v1143 = vadd.f32 %v1141, %v1142
    %v1144 = vsel %vm263, %v919, 0.0
    %v1145 = vrot.slane %v1144, 4
    %v1146 = vadd.f32 %v1144, %v1145
    %v1147 = vrot.slane %v1146, 2
    %v1148 = vadd.f32 %v1146, %v1147
    %v1149 = vrot.slane %v1148, 1
    %v1150 = vadd.f32 %v1148, %v1149
    %v1151 = vsel %vm263, %v927, 0.0
    %v1152 = vrot.slane %v1151, 4
    %v1153 = vadd.f32 %v1151, %v1152
    %v1154 = vrot.slane %v1153, 2
    %v1155 = vadd.f32 %v1153, %v1154
    %v1156 = vrot.slane %v1155, 1
    %v1157 = vadd.f32 %v1155, %v1156
    %v1158 = vsel %vm263, %v935, 0.0
    %v1159 = vrot.slane %v1158, 4
    %v1160 = vadd.f32 %v1158, %v1159
    %v1161 = vrot.slane %v1160, 2
    %v1162 = vadd.f32 %v1160, %v1161
    %v1163 = vrot.slane %v1162, 1
    %v1164 = vadd.f32 %v1162, %v1163
    %v1165 = vsel %vm263, %v934, 0.0
    %v1166 = vrot.slane %v1165, 4
    %v1167 = vadd.f32 %v1165, %v1166
    %v1168 = vrot.slane %v1167, 2
    %v1169 = vadd.f32 %v1167, %v1168
    %v1170 = vrot.slane %v1169, 1
    %v1171 = vadd.f32 %v1169, %v1170
    %v1172 = vsel %vm263, %v936, 0.0
    %v1173 = vrot.slane %v1172, 4
    %v1174 = vadd.f32 %v1172, %v1173
    %v1175 = vrot.slane %v1174, 2
    %v1176 = vadd.f32 %v1174, %v1175
    %v1177 = vrot.slane %v1176, 1
    %v1178 = vadd.f32 %v1176, %v1177
    %v1179 = vsel %vm263, %v944, 0.0
    %v1180 = vrot.slane %v1179, 4
    %v1181 = vadd.f32 %v1179, %v1180
    %v1182 = vrot.slane %v1181, 2
    %v1183 = vadd.f32 %v1181, %v1182
    %v1184 = vrot.slane %v1183, 1
    %v1185 = vadd.f32 %v1183, %v1184
    %v1186 = vsel %vm263, %v952, 0.0
    %v1187 = vrot.slane %v1186, 4
    %v1188 = vadd.f32 %v1186, %v1187
    %v1189 = vrot.slane %v1188, 2
    %v1190 = vadd.f32 %v1188, %v1189
    %v1191 = vrot.slane %v1190, 1
    %v1192 = vadd.f32 %v1190, %v1191
    %v1193 = vsel %vm263, %v951, 0.0
    %v1194 = vrot.slane %v1193, 4
    %v1195 = vadd.f32 %v1193, %v1194
    %v1196 = vrot.slane %v1195, 2
    %v1197 = vadd.f32 %v1195, %v1196
    %v1198 = vrot.slane %v1197, 1
    %v1199 = vadd.f32 %v1197, %v1198
    %v1200 = vsel %vm263, %v953, 0.0
    %v1201 = vrot.slane %v1200, 4
    %v1202 = vadd.f32 %v1200, %v1201
    %v1203 = vrot.slane %v1202, 2
    %v1204 = vadd.f32 %v1202, %v1203
    %v1205 = vrot.slane %v1204, 1
    %v1206 = vadd.f32 %v1204, %v1205
    %v1207 = vsel %vm263, %v961, 0.0
    %v1208 = vrot.slane %v1207, 4
    %v1209 = vadd.f32 %v1207, %v1208
    %v1210 = vrot.slane %v1209, 2
    %v1211 = vadd.f32 %v1209, %v1210
    %v1212 = vrot.slane %v1211, 1
    %v1213 = vadd.f32 %v1211, %v1212
    %v1214 = vsel %vm263, %v969, 0.0
    %v1215 = vrot.slane %v1214, 4
    %v1216 = vadd.f32 %v1214, %v1215
    %v1217 = vrot.slane %v1216, 2
    %v1218 = vadd.f32 %v1216, %v1217
    %v1219 = vrot.slane %v1218, 1
    %v1220 = vadd.f32 %v1218, %v1219
    %v1221 = vsel %vm263, %v968, 0.0
    %v1222 = vrot.slane %v1221, 4
    %v1223 = vadd.f32 %v1221, %v1222
    %v1224 = vrot.slane %v1223, 2
    %v1225 = vadd.f32 %v1223, %v1224
    %v1226 = vrot.slane %v1225, 1
    %v1227 = vadd.f32 %v1225, %v1226
    %v1228 = vsel %vm263, %v970, 0.0
    %v1229 = vrot.slane %v1228, 4
    %v1230 = vadd.f32 %v1228, %v1229
    %v1231 = vrot.slane %v1230, 2
    %v1232 = vadd.f32 %v1230, %v1231
    %v1233 = vrot.slane %v1232, 1
    %v1234 = vadd.f32 %v1232, %v1233
    %v1235 = vsel %vm263, %v978, 0.0
    %v1236 = vrot.slane %v1235, 4
    %v1237 = vadd.f32 %v1235, %v1236
    %v1238 = vrot.slane %v1237, 2
    %v1239 = vadd.f32 %v1237, %v1238
    %v1240 = vrot.slane %v1239, 1
    %v1241 = vadd.f32 %v1239, %v1240
    %v1242 = vsel %vm263, %v986, 0.0
    %v1243 = vrot.slane %v1242, 4
    %v1244 = vadd.f32 %v1242, %v1243
    %v1245 = vrot.slane %v1244, 2
    %v1246 = vadd.f32 %v1244, %v1245
    %v1247 = vrot.slane %v1246, 1
    %v1248 = vadd.f32 %v1246, %v1247
    %v1249 = vsel %vm263, %v985, 0.0
    %v1250 = vrot.slane %v1249, 4
    %v1251 = vadd.f32 %v1249, %v1250
    %v1252 = vrot.slane %v1251, 2
    %v1253 = vadd.f32 %v1251, %v1252
    %v1254 = vrot.slane %v1253, 1
    %v1255 = vadd.f32 %v1253, %v1254
    %v1256 = vsel %vm263, %v987, 0.0
    %v1257 = vrot.slane %v1256, 4
    %v1258 = vadd.f32 %v1256, %v1257
    %v1259 = vrot.slane %v1258, 2
    %v1260 = vadd.f32 %v1258, %v1259
    %v1261 = vrot.slane %v1260, 1
    %v1262 = vadd.f32 %v1260, %v1261
    %v1263 = vsel %vm263, %v995, 0.0
    %v1264 = vrot.slane %v1263, 4
    %v1265 = vadd.f32 %v1263, %v1264
    %v1266 = vrot.slane %v1265, 2
    %v1267 = vadd.f32 %v1265, %v1266
    %v1268 = vrot.slane %v1267, 1
    %v1269 = vadd.f32 %v1267, %v1268
    %v1270 = vsel %vm263, %v1003, 0.0
    %v1271 = vrot.slane %v1270, 4
    %v1272 = vadd.f32 %v1270, %v1271
    %v1273 = vrot.slane %v1272, 2
    %v1274 = vadd.f32 %v1272, %v1273
    %v1275 = vrot.slane %v1274, 1
    %v1276 = vadd.f32 %v1274, %v1275
    %v1277 = vsel %vm263, %v1002, 0.0
    %v1278 = vrot.slane %v1277, 4
    %v1279 = vadd.f32 %v1277, %v1278
    %v1280 = vrot.slane %v1279, 2
    %v1281 = vadd.f32 %v1279, %v1280
    %v1282 = vrot.slane %v1281, 1
    %v1283 = vadd.f32 %v1281, %v1282
    %v1284 = vsel %vm263, %v1004, 0.0
    %v1285 = vrot.slane %v1284, 4
    %v1286 = vadd.f32 %v1284, %v1285
    %v1287 = vrot.slane %v1286, 2
    %v1288 = vadd.f32 %v1286, %v1287
    %v1289 = vrot.slane %v1288, 1
    %v1290 = vadd.f32 %v1288, %v1289
    %v1291 = vsel %vm263, %v1012, 0.0
    %v1292 = vrot.slane %v1291, 4
    %v1293 = vadd.f32 %v1291, %v1292
    %v1294 = vrot.slane %v1293, 2
    %v1295 = vadd.f32 %v1293, %v1294
    %v1296 = vrot.slane %v1295, 1
    %v1297 = vadd.f32 %v1295, %v1296
    %v1298 = vsel %vm263, %v1020, 0.0
    %v1299 = vrot.slane %v1298, 4
    %v1300 = vadd.f32 %v1298, %v1299
    %v1301 = vrot.slane %v1300, 2
    %v1302 = vadd.f32 %v1300, %v1301
    %v1303 = vrot.slane %v1302, 1
    %v1304 = vadd.f32 %v1302, %v1303
    %v1305 = vsel %vm263, %v1019, 0.0
    %v1306 = vrot.slane %v1305, 4
    %v1307 = vadd.f32 %v1305, %v1306
    %v1308 = vrot.slane %v1307, 2
    %v1309 = vadd.f32 %v1307, %v1308
    %v1310 = vrot.slane %v1309, 1
    %v1311 = vadd.f32 %v1309, %v1310
    %v1312 = vsel %vm263, %v1021, 0.0
    %v1313 = vrot.slane %v1312, 4
    %v1314 = vadd.f32 %v1312, %v1313
    %v1315 = vrot.slane %v1314, 2
    %v1316 = vadd.f32 %v1314, %v1315
    %v1317 = vrot.slane %v1316, 1
    %v1318 = vadd.f32 %v1316, %v1317
    %v1319 = vsel %vm263, %v1029, 0.0
    %v1320 = vrot.slane %v1319, 4
    %v1321 = vadd.f32 %v1319, %v1320
    %v1322 = vrot.slane %v1321, 2
    %v1323 = vadd.f32 %v1321, %v1322
    %v1324 = vrot.slane %v1323, 1
    %v1325 = vadd.f32 %v1323, %v1324
    %v1326 = vsel %vm263, %v1037, 0.0
    %v1327 = vrot.slane %v1326, 4
    %v1328 = vadd.f32 %v1326, %v1327
    %v1329 = vrot.slane %v1328, 2
    %v1330 = vadd.f32 %v1328, %v1329
    %v1331 = vrot.slane %v1330, 1
    %v1332 = vadd.f32 %v1330, %v1331
    %v1333 = vsel %vm263, %v1036, 0.0
    %v1334 = vrot.slane %v1333, 4
    %v1335 = vadd.f32 %v1333, %v1334
    %v1336 = vrot.slane %v1335, 2
    %v1337 = vadd.f32 %v1335, %v1336
    %v1338 = vrot.slane %v1337, 1
    %v1339 = vadd.f32 %v1337, %v1338
    %v1340 = vsel %vm263, %v1038, 0.0
    %v1341 = vrot.slane %v1340, 4
    %v1342 = vadd.f32 %v1340, %v1341
    %v1343 = vrot.slane %v1342, 2
    %v1344 = vadd.f32 %v1342, %v1343
    %v1345 = vrot.slane %v1344, 1
    %v1346 = vadd.f32 %v1344, %v1345
    %v1347 = vsel %vm263, %v1046, 0.0
    %v1348 = vrot.slane %v1347, 4
    %v1349 = vadd.f32 %v1347, %v1348
    %v1350 = vrot.slane %v1349, 2
    %v1351 = vadd.f32 %v1349, %v1350
    %v1352 = vrot.slane %v1351, 1
    %v1353 = vadd.f32 %v1351, %v1352
    %v1354 = vsel %vm263, %v1054, 0.0
    %v1355 = vrot.slane %v1354, 4
    %v1356 = vadd.f32 %v1354, %v1355
    %v1357 = vrot.slane %v1356, 2
    %v1358 = vadd.f32 %v1356, %v1357
    %v1359 = vrot.slane %v1358, 1
    %v1360 = vadd.f32 %v1358, %v1359
    %v1361 = vsel %vm263, %v1053, 0.0
    %v1362 = vrot.slane %v1361, 4
    %v1363 = vadd.f32 %v1361, %v1362
    %v1364 = vrot.slane %v1363, 2
    %v1365 = vadd.f32 %v1363, %v1364
    %v1366 = vrot.slane %v1365, 1
    %v1367 = vadd.f32 %v1365, %v1366
    %v1368 = vsel %vm263, %v1055, 0.0
    %v1369 = vrot.slane %v1368, 4
    %v1370 = vadd.f32 %v1368, %v1369
    %v1371 = vrot.slane %v1370, 2
    %v1372 = vadd.f32 %v1370, %v1371
    %v1373 = vrot.slane %v1372, 1
    %v1374 = vadd.f32 %v1372, %v1373
    %v1375 = vsel %vm263, %v1063, 0.0
    %v1376 = vrot.slane %v1375, 4
    %v1377 = vadd.f32 %v1375, %v1376
    %v1378 = vrot.slane %v1377, 2
    %v1379 = vadd.f32 %v1377, %v1378
    %v1380 = vrot.slane %v1379, 1
    %v1381 = vadd.f32 %v1379, %v1380
    %v1382 = vsel %vm263, %v1071, 0.0
    %v1383 = vrot.slane %v1382, 4
    %v1384 = vadd.f32 %v1382, %v1383
    %v1385 = vrot.slane %v1384, 2
    %v1386 = vadd.f32 %v1384, %v1385
    %v1387 = vrot.slane %v1386, 1
    %v1388 = vadd.f32 %v1386, %v1387
    %v1389 = vsel %vm263, %v1070, 0.0
    %v1390 = vrot.slane %v1389, 4
    %v1391 = vadd.f32 %v1389, %v1390
    %v1392 = vrot.slane %v1391, 2
    %v1393 = vadd.f32 %v1391, %v1392
    %v1394 = vrot.slane %v1393, 1
    %v1395 = vadd.f32 %v1393, %v1394
    %v1396 = vsel %vm263, %v1072, 0.0
    %v1397 = vrot.slane %v1396, 4
    %v1398 = vadd.f32 %v1396, %v1397
    %v1399 = vrot.slane %v1398, 2
    %v1400 = vadd.f32 %v1398, %v1399
    %v1401 = vrot.slane %v1400, 1
    %v1402 = vadd.f32 %v1400, %v1401
    %v1403 = vsel %vm263, %v1079, 0.0
    %v1404 = vrot.slane %v1403, 4
    %v1405 = vadd.f32 %v1403, %v1404
    %v1406 = vrot.slane %v1405, 2
    %v1407 = vadd.f32 %v1405, %v1406
    %v1408 = vrot.slane %v1407, 1
    %v1409 = vadd.f32 %v1407, %v1408
    %v1410 = vsel %vm263, %v1080, 0.0
    %v1411 = vrot.slane %v1410, 4
    %v1412 = vadd.f32 %v1410, %v1411
    %v1413 = vrot.slane %v1412, 2
    %v1414 = vadd.f32 %v1412, %v1413
    %v1415 = vrot.slane %v1414, 1
    %v1416 = vadd.f32 %v1414, %v1415
    %v1459 = vcombine.low %v1129, %v1136
    %v1460 = vcombine.low %v1143, %v1150
    %v1461 = vcombine.low %v1157, %v1164
    %v1462 = vcombine.low %v1171, %v1178
    %v1464 = vunpack.c.l.s4 1966171168
    %v1465 = vunpack.c.0.s8 %v1464
    %v1466 = vlaneseq
    %v1467 = vshrl.u32 %v1466, 7
    %v1468 = vsub.s32 %v1465, %v1467
    %v1469 = vrot.slane %v1459, %v1468
    %v1471 = vunpack.c.l.s4 1966171168
    %v1472 = vunpack.c.0.s8 %v1471
    %v1473 = vlaneseq
    %v1474 = vshrl.u32 %v1473, 7
    %v1475 = vsub.s32 %v1472, %v1474
    %v1476 = vrot.slane %v1460, %v1475
    %v1478 = vunpack.c.l.s4 1966171168
    %v1479 = vunpack.c.0.s8 %v1478
    %v1480 = vlaneseq
    %v1481 = vshrl.u32 %v1480, 7
    %v1482 = vsub.s32 %v1479, %v1481
    %v1483 = vrot.slane %v1461, %v1482
    %v1485 = vunpack.c.l.s4 1966171168
    %v1486 = vunpack.c.0.s8 %v1485
    %v1487 = vlaneseq
    %v1488 = vshrl.u32 %v1487, 7
    %v1489 = vsub.s32 %v1486, %v1488
    %v1490 = vrot.slane %v1462, %v1489
    %v1491 = vcombine.low %v1469, %v1476
    %v1492 = vcombine.low %v1483, %v1490
    %v1494 = vunpack.c.l.s4 1966171168
    %v1495 = vunpack.c.0.s8 %v1494
    %v1496 = vlaneseq
    %v1497 = vshrl.u32 %v1496, 7
    %v1498 = vsub.s32 %v1495, %v1497
    %v1499 = vrot.slane %v1491, %v1498
    %v1501 = vunpack.c.l.s4 1966171168
    %v1502 = vunpack.c.0.s8 %v1501
    %v1503 = vlaneseq
    %v1504 = vshrl.u32 %v1503, 7
    %v1505 = vsub.s32 %v1502, %v1504
    %v1506 = vrot.slane %v1492, %v1505
    %v1507 = vcombine.low %v1499, %v1506
    %v1508 = vcombine.low %v1185, %v1192
    %v1509 = vcombine.low %v1199, %v1206
    %v1510 = vcombine.low %v1213, %v1220
    %v1511 = vcombine.low %v1227, %v1234
    %v1513 = vunpack.c.l.s4 1966171168
    %v1514 = vunpack.c.0.s8 %v1513
    %v1515 = vlaneseq
    %v1516 = vshrl.u32 %v1515, 7
    %v1517 = vsub.s32 %v1514, %v1516
    %v1518 = vrot.slane %v1508, %v1517
    %v1520 = vunpack.c.l.s4 1966171168
    %v1521 = vunpack.c.0.s8 %v1520
    %v1522 = vlaneseq
    %v1523 = vshrl.u32 %v1522, 7
    %v1524 = vsub.s32 %v1521, %v1523
    %v1525 = vrot.slane %v1509, %v1524
    %v1527 = vunpack.c.l.s4 1966171168
    %v1528 = vunpack.c.0.s8 %v1527
    %v1529 = vlaneseq
    %v1530 = vshrl.u32 %v1529, 7
    %v1531 = vsub.s32 %v1528, %v1530
    %v1532 = vrot.slane %v1510, %v1531
    %v1534 = vunpack.c.l.s4 1966171168
    %v1535 = vunpack.c.0.s8 %v1534
    %v1536 = vlaneseq
    %v1537 = vshrl.u32 %v1536, 7
    %v1538 = vsub.s32 %v1535, %v1537
    %v1539 = vrot.slane %v1511, %v1538
    %v1540 = vcombine.low %v1518, %v1525
    %v1541 = vcombine.low %v1532, %v1539
    %v1543 = vunpack.c.l.s4 1966171168
    %v1544 = vunpack.c.0.s8 %v1543
    %v1545 = vlaneseq
    %v1546 = vshrl.u32 %v1545, 7
    %v1547 = vsub.s32 %v1544, %v1546
    %v1548 = vrot.slane %v1540, %v1547
    %v1550 = vunpack.c.l.s4 1966171168
    %v1551 = vunpack.c.0.s8 %v1550
    %v1552 = vlaneseq
    %v1553 = vshrl.u32 %v1552, 7
    %v1554 = vsub.s32 %v1551, %v1553
    %v1555 = vrot.slane %v1541, %v1554
    %v1556 = vcombine.low %v1548, %v1555
    %v1557 = vcombine.low %v1241, %v1248
    %v1558 = vcombine.low %v1255, %v1262
    %v1559 = vcombine.low %v1269, %v1276
    %v1560 = vcombine.low %v1283, %v1290
    %v1562 = vunpack.c.l.s4 1966171168
    %v1563 = vunpack.c.0.s8 %v1562
    %v1564 = vlaneseq
    %v1565 = vshrl.u32 %v1564, 7
    %v1566 = vsub.s32 %v1563, %v1565
    %v1567 = vrot.slane %v1557, %v1566
    %v1569 = vunpack.c.l.s4 1966171168
    %v1570 = vunpack.c.0.s8 %v1569
    %v1571 = vlaneseq
    %v1572 = vshrl.u32 %v1571, 7
    %v1573 = vsub.s32 %v1570, %v1572
    %v1574 = vrot.slane %v1558, %v1573
    %v1576 = vunpack.c.l.s4 1966171168
    %v1577 = vunpack.c.0.s8 %v1576
    %v1578 = vlaneseq
    %v1579 = vshrl.u32 %v1578, 7
    %v1580 = vsub.s32 %v1577, %v1579
    %v1581 = vrot.slane %v1559, %v1580
    %v1583 = vunpack.c.l.s4 1966171168
    %v1584 = vunpack.c.0.s8 %v1583
    %v1585 = vlaneseq
    %v1586 = vshrl.u32 %v1585, 7
    %v1587 = vsub.s32 %v1584, %v1586
    %v1588 = vrot.slane %v1560, %v1587
    %v1589 = vcombine.low %v1567, %v1574
    %v1590 = vcombine.low %v1581, %v1588
    %v1592 = vunpack.c.l.s4 1966171168
    %v1593 = vunpack.c.0.s8 %v1592
    %v1594 = vlaneseq
    %v1595 = vshrl.u32 %v1594, 7
    %v1596 = vsub.s32 %v1593, %v1595
    %v1597 = vrot.slane %v1589, %v1596
    %v1599 = vunpack.c.l.s4 1966171168
    %v1600 = vunpack.c.0.s8 %v1599
    %v1601 = vlaneseq
    %v1602 = vshrl.u32 %v1601, 7
    %v1603 = vsub.s32 %v1600, %v1602
    %v1604 = vrot.slane %v1590, %v1603
    %v1605 = vcombine.low %v1597, %v1604
    %v1606 = vcombine.low %v1297, %v1304
    %v1607 = vcombine.low %v1311, %v1318
    %v1608 = vcombine.low %v1325, %v1332
    %v1609 = vcombine.low %v1339, %v1346
    %v1611 = vunpack.c.l.s4 1966171168
    %v1612 = vunpack.c.0.s8 %v1611
    %v1613 = vlaneseq
    %v1614 = vshrl.u32 %v1613, 7
    %v1615 = vsub.s32 %v1612, %v1614
    %v1616 = vrot.slane %v1606, %v1615
    %v1618 = vunpack.c.l.s4 1966171168
    %v1619 = vunpack.c.0.s8 %v1618
    %v1620 = vlaneseq
    %v1621 = vshrl.u32 %v1620, 7
    %v1622 = vsub.s32 %v1619, %v1621
    %v1623 = vrot.slane %v1607, %v1622
    %v1625 = vunpack.c.l.s4 1966171168
    %v1626 = vunpack.c.0.s8 %v1625
    %v1627 = vlaneseq
    %v1628 = vshrl.u32 %v1627, 7
    %v1629 = vsub.s32 %v1626, %v1628
    %v1630 = vrot.slane %v1608, %v1629
    %v1632 = vunpack.c.l.s4 1966171168
    %v1633 = vunpack.c.0.s8 %v1632
    %v1634 = vlaneseq
    %v1635 = vshrl.u32 %v1634, 7
    %v1636 = vsub.s32 %v1633, %v1635
    %v1637 = vrot.slane %v1609, %v1636
    %v1638 = vcombine.low %v1616, %v1623
    %v1639 = vcombine.low %v1630, %v1637
    %v1641 = vunpack.c.l.s4 1966171168
    %v1642 = vunpack.c.0.s8 %v1641
    %v1643 = vlaneseq
    %v1644 = vshrl.u32 %v1643, 7
    %v1645 = vsub.s32 %v1642, %v1644
    %v1646 = vrot.slane %v1638, %v1645
    %v1648 = vunpack.c.l.s4 1966171168
    %v1649 = vunpack.c.0.s8 %v1648
    %v1650 = vlaneseq
    %v1651 = vshrl.u32 %v1650, 7
    %v1652 = vsub.s32 %v1649, %v1651
    %v1653 = vrot.slane %v1639, %v1652
    %v1654 = vcombine.low %v1646, %v1653
    %v1655 = vcombine.low %v1353, %v1360
    %v1656 = vcombine.low %v1367, %v1374
    %v1657 = vcombine.low %v1381, %v1388
    %v1658 = vcombine.low %v1395, %v1402
    %v1660 = vunpack.c.l.s4 1966171168
    %v1661 = vunpack.c.0.s8 %v1660
    %v1662 = vlaneseq
    %v1663 = vshrl.u32 %v1662, 7
    %v1664 = vsub.s32 %v1661, %v1663
    %v1665 = vrot.slane %v1655, %v1664
    %v1667 = vunpack.c.l.s4 1966171168
    %v1668 = vunpack.c.0.s8 %v1667
    %v1669 = vlaneseq
    %v1670 = vshrl.u32 %v1669, 7
    %v1671 = vsub.s32 %v1668, %v1670
    %v1672 = vrot.slane %v1656, %v1671
    %v1674 = vunpack.c.l.s4 1966171168
    %v1675 = vunpack.c.0.s8 %v1674
    %v1676 = vlaneseq
    %v1677 = vshrl.u32 %v1676, 7
    %v1678 = vsub.s32 %v1675, %v1677
    %v1679 = vrot.slane %v1657, %v1678
    %v1681 = vunpack.c.l.s4 1966171168
    %v1682 = vunpack.c.0.s8 %v1681
    %v1683 = vlaneseq
    %v1684 = vshrl.u32 %v1683, 7
    %v1685 = vsub.s32 %v1682, %v1684
    %v1686 = vrot.slane %v1658, %v1685
    %v1687 = vcombine.low %v1665, %v1672
    %v1688 = vcombine.low %v1679, %v1686
    %v1690 = vunpack.c.l.s4 1966171168
    %v1691 = vunpack.c.0.s8 %v1690
    %v1692 = vlaneseq
    %v1693 = vshrl.u32 %v1692, 7
    %v1694 = vsub.s32 %v1691, %v1693
    %v1695 = vrot.slane %v1687, %v1694
    %v1697 = vunpack.c.l.s4 1966171168
    %v1698 = vunpack.c.0.s8 %v1697
    %v1699 = vlaneseq
    %v1700 = vshrl.u32 %v1699, 7
    %v1701 = vsub.s32 %v1698, %v1700
    %v1702 = vrot.slane %v1688, %v1701
    %v1703 = vcombine.low %v1695, %v1702
    %v1704 = vcombine.low %v1409, %v1416
    %v1706 = vunpack.c.l.s4 1966171168
    %v1707 = vunpack.c.0.s8 %v1706
    %v1708 = vlaneseq
    %v1709 = vshrl.u32 %v1708, 7
    %v1710 = vsub.s32 %v1707, %v1709
    %v1711 = vrot.slane %v1704, %v1710
    %v1713 = vunpack.c.l.s4 1966171168
    %v1714 = vunpack.c.0.s8 %v1713
    %v1715 = vlaneseq
    %v1716 = vshrl.u32 %v1715, 7
    %v1717 = vsub.s32 %v1714, %v1716
    %v1718 = vrot.slane %v1711, %v1717
    %s1725 = scalar_lea.vmem [#allocation5], 1
    %1726 = vst [vmem:[%s1725] ss:$2 sm:$0xff] %v1507
    %s1727 = scalar_lea.vmem [#allocation5], 17
    %1728 = vst [vmem:[%s1727] ss:$2 sm:$0xff] %v1556
    %s1729 = scalar_lea.vmem [#allocation5], 33
    %1730 = vst [vmem:[%s1729] ss:$2 sm:$0xff] %v1605
    %s1731 = scalar_lea.vmem [#allocation5], 49
    %1732 = vst [vmem:[%s1731] ss:$2 sm:$0xff] %v1654
    %s1733 = scalar_lea.vmem [#allocation5], 65
    %1734 = vst [vmem:[%s1733] ss:$2 sm:$0xff] %v1703
    %s1735 = scalar_lea.vmem [#allocation5], 81
    %1736 = vst.msk [vmem:[%s1735] ss:$2 sm:$0x3] %vm878, %v1718
    // Predicated region
    $region10: #{tpu_custom_call.1} parent=1 // pred_check
      _
    $region11: #{tpu_custom_call.1} parent=1 // pred_check_branch
      %1738 = sbr.rel (0) target = $region13
    $region12: #{tpu_custom_call.1} parent=1 // pred_region
      %s1740 = ssub.s32 1344, 1344
      %1741 = vsyncadd [#allocation4], %s1740
      %s1743 = sshll.u32 [#allocation5], 4
      %s1744 = int_to_ptr.vmem [resolvable:$true] %s1743
      %1746 = dma.vmem_to_hbm [thread:$0]  %s1744, 1344, %s1, [#allocation4]
    $region13: #{tpu_custom_call.1} parent=1 // pred_fallthru
      _
    // Predicated region
    $region14: #{tpu_custom_call.1} parent=1 // pred_check
      _
    $region15: #{tpu_custom_call.1} parent=1 // pred_check_branch
      %1748 = sbr.rel (0) target = $region17
    $region16: #{tpu_custom_call.1} parent=1 // pred_region
      %1749 = dma.done [#allocation4], 1344
    $region17: #{tpu_custom_call.1} parent=1 // pred_fallthru
      _
    %1750 = vsyncpa [#allocation3], 1
    %1751 = vsyncpa [#allocation4], 1

</llo_original>
